<compile_context>
chip_gen: v7x
topology: tpu7x:2x2x1
jax: 0.10.0
libtpu: 0.0.40
codegen_flags: <defaults>
</compile_context>

<pallas_src>
import jax
import jax.numpy as jnp
from jax.experimental import pallas as pl
from jax.experimental.pallas import tpu as pltpu

BN_EPS = 1e-5
_LANE = 128


def _round_up(x: int, m: int) -> int:
    return ((x + m - 1) // m) * m


def _sublane_pack(itemsize: int) -> int:
    # Rows per packed sublane group: f32 -> 8, bf16 -> 16, int8/fp8 -> 32.
    return {4: 8, 2: 16, 1: 32}.get(itemsize, 8)


def _vmem_capacity_bytes() -> int:
    try:
        info = pltpu.get_tpu_info()
        cap = getattr(info, "vmem_capacity_bytes", None)
        if cap:
            return int(cap)
    except Exception:
        pass
    return 64 << 20  # conservative default (v7x physical VMEM)


# --------------------------------------------------------------------------------------
# Kernels
# --------------------------------------------------------------------------------------

def _layer_block_kernel_single_k(x_ref, w_ref, b_ref, o_ref):
    """Whole K in one block: relu(x @ w + b). No scratch accumulator at all."""
    z = jnp.dot(x_ref[...], w_ref[...], preferred_element_type=jnp.float32) + b_ref[...]
    o_ref[...] = jnp.maximum(z, 0.0).astype(o_ref.dtype)


def _layer_block_kernel_multi_k(x_ref, w_ref, b_ref, o_ref, acc_ref):
    """K split over grid axis 2; f32 accumulator initialized with bias at k==0."""
    k = pl.program_id(2)
    p = jnp.dot(x_ref[...], w_ref[...], preferred_element_type=jnp.float32)

    @pl.when(k == 0)
    def _():
        # bias-init: avoids zero-store + reload and the epilogue bias add.
        acc_ref[...] = b_ref[...] + p

    @pl.when(k != 0)
    def _():
        acc_ref[...] += p

    @pl.when(k == pl.num_programs(2) - 1)
    def _():
        o_ref[...] = jnp.maximum(acc_ref[...], 0.0).astype(o_ref.dtype)


# --------------------------------------------------------------------------------------
# One-time parameter preparation (OUTSIDE the hot path)
# --------------------------------------------------------------------------------------

def fold_bn_into_linear(weight, bias, gamma, beta, running_mean, running_var,
                        eps=BN_EPS, compute_dtype=None):
    """Fold eval-mode BatchNorm into the Linear params, transpose, and pad to lane
    multiples so layer_block never re-pads parameters per call.

    weight: (out_features, in_features)  [PyTorch layout]
    Returns:
      w_folded: (round_up(in,128), round_up(out,128)) in compute_dtype (default weight.dtype)
      b_folded: (1, round_up(out,128)) float32
    Pass compute_dtype=jnp.bfloat16 for full MXU rate / half the weight HBM bytes.
    """
    out_f, in_f = weight.shape
    scale = gamma.astype(jnp.float32) * jax.lax.rsqrt(
        running_var.astype(jnp.float32) + eps)                        # (out,)
    w = (weight.astype(jnp.float32) * scale[:, None]).T               # (in, out)
    b = (bias.astype(jnp.float32) - running_mean.astype(jnp.float32)) * scale \
        + beta.astype(jnp.float32)                                    # (out,)

    Kp = _round_up(in_f, _LANE)
    Np = _round_up(out_f, _LANE)
    w = jnp.pad(w, ((0, Kp - in_f), (0, Np - out_f)))
    b = jnp.pad(b, (0, Np - out_f)).reshape(1, Np)

    w = w.astype(compute_dtype if compute_dtype is not None else weight.dtype)
    return w, b


# --------------------------------------------------------------------------------------
# Tile planning + wrapper
# --------------------------------------------------------------------------------------

def _choose_tiles(B, Kp, Np, in_bytes, out_bytes, budget,
                  max_tm=512, max_tn=2048, max_tk=2048):
    sub = _sublane_pack(in_bytes)
    tm = min(_round_up(B, sub), _round_up(max_tm, sub))
    tn = min(Np, _round_up(max_tn, _LANE))   # prefer covering all of N in one block
    tk = min(Kp, _round_up(max_tk, _LANE))   # prefer collapsing K entirely

    def fits(tm_, tn_, tk_):
        x_t = tm_ * tk_ * in_bytes
        w_t = tk_ * tn_ * in_bytes
        o_t = tm_ * tn_ * out_bytes
        b_t = tn_ * 4
        acc = tm_ * tn_ * 4 if tk_ < Kp else 0          # scratch only if K is split
        return 2 * (x_t + w_t + o_t + b_t) + acc <= budget

    while not fits(tm, tn, tk):
        if tk >= tn and tk > _LANE:
            tk = max(_LANE, tk // 2)
        elif tn > _LANE:
            tn = max(_LANE, tn // 2)
        elif tm > sub:
            tm = max(sub, tm // 2)
        else:
            break

    # v7x megacore: guarantee >= 2 blocks on a "parallel" axis so both TensorCores
    # get work. Harmless on v5e/v6e (single TC); cheap since x re-reads are tiny.
    if _round_up(B, tm) // tm == 1 and _round_up(Np, tn) // tn == 1 and tn >= 2 * _LANE:
        tn //= 2
    return tm, tn, tk


def layer_block(x, w_folded, b_folded, out_features=None, *,
                out_dtype=None, max_tm=512, max_tn=2048, max_tk=2048):
    """relu(x @ w_folded + b_folded): tiled, pipelined Pallas matmul with fused epilogue.

    x:        (B, in_features)
    w_folded: (Kp, Np) padded params from fold_bn_into_linear
    b_folded: (1, Np)  padded bias from fold_bn_into_linear
    """
    B, in_f = x.shape
    Kp, Np = w_folded.shape
    assert Kp >= in_f and Kp % _LANE == 0 and Np % _LANE == 0, \
        "use fold_bn_into_linear() to prepare (transposed, padded) parameters"
    out_f = Np if out_features is None else out_features
    out_dtype = x.dtype if out_dtype is None else out_dtype

    # Match activation dtype to the (possibly bf16) folded weights for the MXU.
    if x.dtype != w_folded.dtype:
        x = x.astype(w_folded.dtype)

    in_bytes = jnp.dtype(w_folded.dtype).itemsize
    out_bytes = jnp.dtype(out_dtype).itemsize

    # Per-generation VMEM budget: ~56 MiB on v7x (64 MiB physical),
    # ~112 MiB on v5e/v6e (128 MiB physical). Tiles use ~75% of that.
    cap = _vmem_capacity_bytes()
    vmem_limit = max(32 << 20, min(cap - (8 << 20), 112 << 20))
    tile_budget = int(vmem_limit * 0.75)

    tm, tn, tk = _choose_tiles(B, Kp, Np, in_bytes, out_bytes, tile_budget,
                               max_tm=max_tm, max_tn=max_tn, max_tk=max_tk)

    Bp = _round_up(B, tm)
    Kp2 = _round_up(Kp, tk)
    Np2 = _round_up(Np, tn)

    # Pad activations only when needed (zeros contribute nothing to the matmul).
    if Bp != B or Kp2 != in_f:
        x_p = jnp.pad(x, ((0, Bp - B), (0, Kp2 - in_f)))
    else:
        x_p = x
    # Params were padded once at fold time; extra padding only in the rare case the
    # chosen tile does not divide the lane-padded extents.
    w_p = w_folded if (Kp2 == Kp and Np2 == Np) else jnp.pad(
        w_folded, ((0, Kp2 - Kp), (0, Np2 - Np)))
    b_p = b_folded if Np2 == Np else jnp.pad(b_folded, ((0, 0), (0, Np2 - Np)))

    gm, gn, gk = Bp // tm, Np2 // tn, Kp2 // tk
    out_shape = jax.ShapeDtypeStruct((Bp, Np2), out_dtype)

    if gk == 1:
        # No K grid axis, no scratch accumulator, fused bias+ReLU in a single store.
        out_p = pl.pallas_call(
            _layer_block_kernel_single_k,
            out_shape=out_shape,
            grid_spec=pltpu.PrefetchScalarGridSpec(
                num_scalar_prefetch=0,
                grid=(gm, gn),
                in_specs=[
                    pl.BlockSpec((tm, tk), lambda i, j: (i, 0)),   # x tile (full K)
                    pl.BlockSpec((tk, tn), lambda i, j: (0, j)),   # w tile (full K)
                    pl.BlockSpec((1, tn), lambda i, j: (0, j)),    # folded bias row
                ],
                out_specs=pl.BlockSpec((tm, tn), lambda i, j: (i, j)),
            ),
            compiler_params=pltpu.CompilerParams(
                dimension_semantics=("parallel", "parallel"),
                vmem_limit_bytes=vmem_limit,
            ),
        )(x_p, w_p, b_p)
    else:
        out_p = pl.pallas_call(
            _layer_block_kernel_multi_k,
            out_shape=out_shape,
            grid_spec=pltpu.PrefetchScalarGridSpec(
                num_scalar_prefetch=0,
                grid=(gm, gn, gk),
                in_specs=[
                    pl.BlockSpec((tm, tk), lambda i, j, k: (i, k)),
                    pl.BlockSpec((tk, tn), lambda i, j, k: (k, j)),
                    pl.BlockSpec((1, tn), lambda i, j, k: (0, j)),
                ],
                out_specs=pl.BlockSpec((tm, tn), lambda i, j, k: (i, j)),
                scratch_shapes=[pltpu.VMEM((tm, tn), jnp.float32)],
            ),
            compiler_params=pltpu.CompilerParams(
                dimension_semantics=("parallel", "parallel", "arbitrary"),
                vmem_limit_bytes=vmem_limit,
            ),
        )(x_p, w_p, b_p)

    return out_p[:B, :out_f]


# --------------------------------------------------------------------------------------
# Pure-JAX reference and demo
# --------------------------------------------------------------------------------------

def layer_block_ref(x, weight, bias, gamma, beta, running_mean, running_var):
    """Linear -> (eval) Dropout -> (eval) BatchNorm1d -> ReLU."""
    z = x.astype(jnp.float32) @ weight.astype(jnp.float32).T + bias
    z = (z - running_mean) * jax.lax.rsqrt(running_var + BN_EPS) * gamma + beta
    return jnp.maximum(z, 0.0).astype(x.dtype)


def _make_params(key, in_f, out_f):
    k_w, k_b, k_g, k_be, k_m, k_v = jax.random.split(key, 6)
    weight = jax.random.normal(k_w, (out_f, in_f), jnp.float32) * 0.1
    bias = jax.random.normal(k_b, (out_f,), jnp.float32) * 0.1
    gamma = 1.0 + 0.1 * jax.random.normal(k_g, (out_f,), jnp.float32)
    beta = 0.1 * jax.random.normal(k_be, (out_f,), jnp.float32)
    running_mean = 0.1 * jax.random.normal(k_m, (out_f,), jnp.float32)
    running_var = jnp.abs(1.0 + 0.1 * jax.random.normal(k_v, (out_f,), jnp.float32))
    return weight, bias, gamma, beta, running_mean, running_var


if __name__ == "__main__":
    key = jax.random.PRNGKey(0)
    k1, k2, k3, k4 = jax.random.split(key, 4)

    # --- Case 1: small shapes, single-K-block (no accumulator) path -------------------
    batch, in_features, out_features = 8, 32, 64
    x = jax.random.normal(k1, (batch, in_features), jnp.float32)
    params = _make_params(k2, in_features, out_features)

    w_folded, b_folded = fold_bn_into_linear(*params)          # one-time prep
    out = layer_block(x, w_folded, b_folded, out_features)
    out = jax.block_until_ready(out)

    ref = layer_block_ref(x, *params)
    assert out.shape == (batch, out_features)
    assert jnp.allclose(out, ref, atol=1e-4, rtol=1e-4), "mismatch vs reference (single-K)"

    # --- Case 2: force the K grid axis / bias-initialized accumulator path ------------
    batch2, in2, out2 = 16, 256, 128
    x2 = jax.random.normal(k3, (batch2, in2), jnp.float32)
    params2 = _make_params(k4, in2, out2)
    w2, b2 = fold_bn_into_linear(*params2)
    out2_arr = layer_block(x2, w2, b2, out2, max_tk=128)        # -> grid K axis of 2
    out2_arr = jax.block_until_ready(out2_arr)
    ref2 = layer_block_ref(x2, *params2)
    assert out2_arr.shape == (batch2, out2)
    assert jnp.allclose(out2_arr, ref2, atol=1e-3, rtol=1e-3), "mismatch vs reference (multi-K)"

    print("KERNEL_OK")
</pallas_src>

<mosaic_0001>
module attributes {stable_mosaic.version = 11 : i64} {
  func.func @_layer_block_kernel_single_k(%arg0: i32, %arg1: i32, %arg2: memref<8x128xf32, #tpu.memory_space<vmem>>, %arg3: memref<128x128xf32, #tpu.memory_space<vmem>>, %arg4: memref<1x128xf32, #tpu.memory_space<vmem>>, %arg5: memref<8x128xf32, #tpu.memory_space<vmem>>) attributes {dimension_semantics = [#tpu.dimension_semantics<parallel>, #tpu.dimension_semantics<parallel>], iteration_bounds = array<i64: 1, 1>, scalar_prefetch = 0 : i64, scratch_operands = 0 : i64, tpu.core_type = #tpu.core_type<tc>, window_params = [{transform_indices = @transform_0, window_bounds = array<i64: 8, 128>}, {transform_indices = @transform_1, window_bounds = array<i64: 128, 128>}, {transform_indices = @transform_2, window_bounds = array<i64: 1, 128>}, {transform_indices = @transform_3, window_bounds = array<i64: 8, 128>}]} {
    %c0 = arith.constant 0 : index
    %c0_0 = arith.constant 0 : index
    %0 = vector.load %arg2[%c0, %c0_0] : memref<8x128xf32, #tpu.memory_space<vmem>>, vector<8x128xf32>
    %c0_1 = arith.constant 0 : index
    %c0_2 = arith.constant 0 : index
    %1 = vector.load %arg3[%c0_1, %c0_2] : memref<128x128xf32, #tpu.memory_space<vmem>>, vector<128x128xf32>
    %cst = arith.constant dense<0.000000e+00> : vector<8x128xf32>
    %2 = tpu.matmul %0, %1, %cst {dimension_numbers = #tpu.dot_dimension_numbers<[1], [0], [0], [1], [0, 0, 1, 1], [], []>} : vector<8x128xf32>, vector<128x128xf32>, vector<8x128xf32> -> vector<8x128xf32>
    %c0_3 = arith.constant 0 : index
    %c0_4 = arith.constant 0 : index
    %3 = vector.load %arg4[%c0_3, %c0_4] : memref<1x128xf32, #tpu.memory_space<vmem>>, vector<1x128xf32>
    %4 = vector.broadcast %3 : vector<1x128xf32> to vector<8x128xf32>
    %5 = arith.addf %2, %4 : vector<8x128xf32>
    %cst_5 = arith.constant 0.000000e+00 : f32
    %6 = vector.broadcast %cst_5 : f32 to vector<8x128xf32>
    %7 = arith.maximumf %5, %6 : vector<8x128xf32>
    %c0_6 = arith.constant 0 : index
    %c0_7 = arith.constant 0 : index
    %8 = vector.load %arg5[%c0_6, %c0_7] : memref<8x128xf32, #tpu.memory_space<vmem>>, vector<8x128xf32>
    tpu.vector_store %arg5[%c0_6, %c0_7], %7 {strides = array<i32>} : memref<8x128xf32, #tpu.memory_space<vmem>>, vector<8x128xf32>,
    return
  }
  func.func @transform_0(%arg0: i32, %arg1: i32) -> (i32, i32) {
    %c0_i32 = arith.constant 0 : i32
    %c0_i32_0 = arith.constant 0 : i32
    return %arg0, %c0_i32 : i32, i32
  }
  func.func @transform_1(%arg0: i32, %arg1: i32) -> (i32, i32) {
    %c0_i32 = arith.constant 0 : i32
    %c0_i32_0 = arith.constant 0 : i32
    return %c0_i32, %arg1 : i32, i32
  }
  func.func @transform_2(%arg0: i32, %arg1: i32) -> (i32, i32) {
    %c0_i32 = arith.constant 0 : i32
    %c0_i32_0 = arith.constant 0 : i32
    return %c0_i32, %arg1 : i32, i32
  }
  func.func @transform_3(%arg0: i32, %arg1: i32) -> (i32, i32) {
    %c0_i32 = arith.constant 0 : i32
    return %arg0, %arg1 : i32, i32
  }
}

</mosaic_0001>

<llo_original>
// kernel: tpu_custom_call.1
$region0: #{tpu_custom_call.1}
  #allocation0 [shape = 'u32[]', space=smem, size = 0x4, offset = 0x4, fixed_abs, tag = 'smem constant byte address 0x4 - core index']
  #allocation1 [shape = 'u32[144,128]{1,0:T(1,128)}', space=vmem, size = 0x12000, scoped, tag = 'internal scratch']
  %s0 = inlined_call_operand.hbm [shape: f32[8,128], index: 0, kind: input, shape index: {}]
  %s1 = inlined_call_operand.hbm [shape: f32[128,128], index: 1, kind: input, shape index: {}]
  %s2 = inlined_call_operand.vmem [shape: f32[1,128], index: 2, kind: input, shape index: {}]
  %s3 = inlined_call_operand.hbm [shape: f32[8,128], index: 3, kind: output, shape index: {}]
  %s4 = sld [smem:[#allocation0]]
  $region30: #{tpu_custom_call.1} parent=0
    _
  %s6 = ssub.s32 1, %s4
  %s7 = scalar_select 0, %s6, %s4
  $region1: #{tpu_custom_call.1} parent=0
    #allocation2 [shape = 'u8[4096]{0}', space=vmem, size = 0x1000, scoped, tag = 'input window, operand 0, single buffered']
    #allocation3 [shape = 's32[1]{0}', space=sflag, size = 0x4, scoped, tag = 'scoped memory for tpu_custom_call.1']
    #allocation4 [shape = 's32[1]{0}', space=sflag, size = 0x4, scoped, tag = 'scoped memory for tpu_custom_call.1']
    #allocation5 [shape = 'u8[65536]{0}', space=vmem, size = 0x10000, scoped, tag = 'input window, operand 1, single buffered']
    #allocation6 [shape = 's32[1]{0}', space=sflag, size = 0x4, scoped, tag = 'scoped memory for tpu_custom_call.1']
    #allocation7 [shape = 'u8[4096]{0}', space=vmem, size = 0x1000, scoped, tag = 'output window, operand 0, single buffered']
    %8 = vsyncpa [#allocation3], 0
    %9 = vsyncpa [#allocation6], 0
    %10 = vsyncpa [#allocation4], 0
    // Predicated region
    $region2: #{tpu_custom_call.1} parent=1 // pred_check
      _
    $region3: #{tpu_custom_call.1} parent=1 // pred_check_branch
      %12 = sbr.rel (0) target = $region5
    $region4: #{tpu_custom_call.1} parent=1 // pred_region
      %s14 = ssub.s32 128, 128
      %15 = vsyncadd [#allocation3], %s14
      %s17 = sshll.u32 [#allocation2], 4
      %s18 = int_to_ptr.vmem [resolvable:$true] %s17
      %20 = dma.hbm_to_vmem [thread:$0]  %s0, 128, %s18, [#allocation3]
    $region5: #{tpu_custom_call.1} parent=1 // pred_fallthru
      _
    // Predicated region
    $region6: #{tpu_custom_call.1} parent=1 // pred_check
      _
    $region7: #{tpu_custom_call.1} parent=1 // pred_check_branch
      %22 = sbr.rel (0) target = $region9
    $region8: #{tpu_custom_call.1} parent=1 // pred_region
      %s24 = ssub.s32 2048, 2048
      %25 = vsyncadd [#allocation6], %s24
      %s26 = sshll.u32 [#allocation5], 4
      %s27 = int_to_ptr.vmem [resolvable:$true] %s26
      %32 = dma.hbm_to_vmem [thread:$0]  %s1, 2048, %s27, [#allocation6], 128, 128, 8
    $region9: #{tpu_custom_call.1} parent=1 // pred_fallthru
      _
    // Predicated region
    $region10: #{tpu_custom_call.1} parent=1 // pred_check
      _
    $region11: #{tpu_custom_call.1} parent=1 // pred_check_branch
      %34 = sbr.rel (0) target = $region13
    $region12: #{tpu_custom_call.1} parent=1 // pred_region
      _
    $region13: #{tpu_custom_call.1} parent=1 // pred_fallthru
      _
    // Predicated region
    $region14: #{tpu_custom_call.1} parent=1 // pred_check
      _
    $region15: #{tpu_custom_call.1} parent=1 // pred_check_branch
      %36 = sbr.rel (0) target = $region17
    $region16: #{tpu_custom_call.1} parent=1 // pred_region
      %37 = dma.done [#allocation3], 128
    $region17: #{tpu_custom_call.1} parent=1 // pred_fallthru
      _
    // Predicated region
    $region18: #{tpu_custom_call.1} parent=1 // pred_check
      _
    $region19: #{tpu_custom_call.1} parent=1 // pred_check_branch
      %39 = sbr.rel (0) target = $region21
    $region20: #{tpu_custom_call.1} parent=1 // pred_region
      %40 = dma.done [#allocation6], 2048
    $region21: #{tpu_custom_call.1} parent=1 // pred_fallthru
      _
    %v41 = vld [vmem:[#allocation2] sm:$0xff]
    %v42 = vld [vmem:[#allocation5] sm:$0xff]
    %v43 = vld [vmem:[#allocation5 + $0x8] sm:$0xff]
    %v44 = vld [vmem:[#allocation5 + $0x10] sm:$0xff]
    %v45 = vld [vmem:[#allocation5 + $0x18] sm:$0xff]
    %v46 = vld [vmem:[#allocation5 + $0x20] sm:$0xff]
    %v47 = vld [vmem:[#allocation5 + $0x28] sm:$0xff]
    %v48 = vld [vmem:[#allocation5 + $0x30] sm:$0xff]
    %v49 = vld [vmem:[#allocation5 + $0x38] sm:$0xff]
    %v50 = vld [vmem:[#allocation5 + $0x40] sm:$0xff]
    %v51 = vld [vmem:[#allocation5 + $0x48] sm:$0xff]
    %v52 = vld [vmem:[#allocation5 + $0x50] sm:$0xff]
    %v53 = vld [vmem:[#allocation5 + $0x58] sm:$0xff]
    %v54 = vld [vmem:[#allocation5 + $0x60] sm:$0xff]
    %v55 = vld [vmem:[#allocation5 + $0x68] sm:$0xff]
    %v56 = vld [vmem:[#allocation5 + $0x70] sm:$0xff]
    %v57 = vld [vmem:[#allocation5 + $0x78] sm:$0xff]
    %v58 = vld [vmem:[%s2] sm:$0x1]
    %v60 = vlaneseq
    %v61 = vshrl.u32 %v60, 7
    %v62 = vsub.s32 0, %v61
    %v63 = vrot.slane %v58, %v62
    %65 = vmatprep.subr.mxu0 0.0
    %66 = vmatpush1.msra.mxu0 %v42
    %67 = vmatprep.subr.mxu0 0.0
    %68 = vmatpush1.msra.mxu0 %v43
    %69 = vmatprep.subr.mxu0 0.0
    %70 = vmatpush1.msra.mxu0 %v44
    %71 = vmatprep.subr.mxu0 0.0
    %72 = vmatpush1.msra.mxu0 %v45
    %73 = vmatprep.subr.mxu0 0.0
    %74 = vmatpush1.msra.mxu0 %v46
    %75 = vmatprep.subr.mxu0 0.0
    %76 = vmatpush1.msra.mxu0 %v47
    %77 = vmatprep.subr.mxu0 0.0
    %78 = vmatpush1.msra.mxu0 %v48
    %79 = vmatprep.subr.mxu0 0.0
    %80 = vmatpush1.msra.mxu0 %v49
    %81 = vmatprep.subr.mxu0 0.0
    %82 = vmatpush1.msra.mxu0 %v50
    %83 = vmatprep.subr.mxu0 0.0
    %84 = vmatpush1.msra.mxu0 %v51
    %85 = vmatprep.subr.mxu0 0.0
    %86 = vmatpush1.msra.mxu0 %v52
    %87 = vmatprep.subr.mxu0 0.0
    %88 = vmatpush1.msra.mxu0 %v53
    %89 = vmatprep.subr.mxu0 0.0
    %90 = vmatpush1.msra.mxu0 %v54
    %91 = vmatprep.subr.mxu0 0.0
    %92 = vmatpush1.msra.mxu0 %v55
    %93 = vmatprep.subr.mxu0 0.0
    %94 = vmatpush1.msra.mxu0 %v56
    %95 = vmatprep.subr.mxu0 0.0
    %96 = vmatpush1.msra.mxu0 %v57
    %97 = vmatprep.subr.mxu0 0.0
    %98 = vmatpush1.msra.mxu0 0.0
    %99 = vmatprep.subr.mxu0 0.0
    %100 = vmatpush1.msra.mxu0 0.0
    %101 = vmatprep.subr.mxu0 0.0
    %102 = vmatpush1.msra.mxu0 0.0
    %103 = vmatprep.subr.mxu0 0.0
    %104 = vmatpush1.msra.mxu0 0.0
    %105 = vmatprep.subr.mxu0 0.0
    %106 = vmatpush1.msra.mxu0 0.0
    %107 = vmatprep.subr.mxu0 0.0
    %108 = vmatpush1.msra.mxu0 0.0
    %109 = vmatprep.subr.mxu0 0.0
    %110 = vmatpush1.msra.mxu0 0.0
    %111 = vmatprep.subr.mxu0 0.0
    %112 = vmatpush1.msra.mxu0 0.0
    %113 = vmatprep.subr.mxu0 0.0
    %114 = vmatpush1.msra.mxu0 0.0
    %115 = vmatprep.subr.mxu0 0.0
    %116 = vmatpush1.msra.mxu0 0.0
    %117 = vmatprep.subr.mxu0 0.0
    %118 = vmatpush1.msra.mxu0 0.0
    %119 = vmatprep.subr.mxu0 0.0
    %120 = vmatpush1.msra.mxu0 0.0
    %121 = vmatprep.subr.mxu0 0.0
    %122 = vmatpush1.msra.mxu0 0.0
    %123 = vmatprep.subr.mxu0 0.0
    %124 = vmatpush1.msra.mxu0 0.0
    %125 = vmatprep.subr.mxu0 0.0
    %126 = vmatpush1.msra.mxu0 0.0
    %127 = vmatprep.subr.mxu0 0.0
    %128 = vmatpush1.msra.mxu0 0.0
    %129 = vmatprep.mubr.f32.mxu0 0.0
    %130 = vmatmul.mubr.f32.gmra.mrb[0].mxu0 %v41
    %v131 = vpop.f32.mrb[0].mxu0
    %v132 = vadd.f32 %v63, %v131
    %v133 = vpop.f32.mrb[0].mxu0
    %134 = vdwg.mxu0
    %v135 = vmax.f32 %v132, 0.0
    %136 = vst [vmem:[#allocation7] sm:$0xff] %v135
    // Predicated region
    $region22: #{tpu_custom_call.1} parent=1 // pred_check
      _
    $region23: #{tpu_custom_call.1} parent=1 // pred_check_branch
      %138 = sbr.rel (0) target = $region25
    $region24: #{tpu_custom_call.1} parent=1 // pred_region
      %s140 = ssub.s32 128, 128
      %141 = vsyncadd [#allocation4], %s140
      %s143 = sshll.u32 [#allocation7], 4
      %s144 = int_to_ptr.vmem [resolvable:$true] %s143
      %146 = dma.vmem_to_hbm [thread:$0]  %s144, 128, %s3, [#allocation4]
    $region25: #{tpu_custom_call.1} parent=1 // pred_fallthru
      _
    // Predicated region
    $region26: #{tpu_custom_call.1} parent=1 // pred_check
      _
    $region27: #{tpu_custom_call.1} parent=1 // pred_check_branch
      %148 = sbr.rel (0) target = $region29
    $region28: #{tpu_custom_call.1} parent=1 // pred_region
      %149 = dma.done [#allocation4], 128
    $region29: #{tpu_custom_call.1} parent=1 // pred_fallthru
      _
    %150 = vsyncpa [#allocation3], 1
    %151 = vsyncpa [#allocation6], 1
    %152 = vsyncpa [#allocation4], 1

</llo_original>
